<compile_context>
chip_gen: v7x
topology: tpu7x:2x2x1
jax: 0.10.0
libtpu: 0.0.40
codegen_flags: <defaults>
</compile_context>

<pallas_src>
import functools
import math

import jax
import jax.numpy as jnp
from jax import lax
from jax.experimental import pallas as pl
from jax.experimental.pallas import tpu as pltpu


def _pick_tile(T, bytes_per_row, align=8, budget_bytes=28 << 20, max_rows=None):
    """Largest align-multiple time tile whose double-buffered streamed footprint
    (2 pipeline buffers x bytes_per_row x tile) fits the budget."""
    tile = budget_bytes // max(2 * bytes_per_row, 1)
    if max_rows is not None:
        tile = min(tile, max_rows)
    tile = min(int(tile), T)
    if tile >= T:
        return T
    tile = (tile // align) * align
    return min(T, max(align, tile))


def _mase_kernel(out_ref, tgt_ref, base_ref, s1_ref, s2_ref,
                 *, tile, t_total, steps, full_blocks, sub, maybe_partial):
    """Accumulate sum|output-target| and sum|baseline-target| for this core's
    slice of time blocks into per-core (1, sub, Dp) output accumulators."""
    c = pl.program_id(0)   # core split ("parallel")
    i = pl.program_id(1)   # time block within the split ("arbitrary")

    @pl.when(i == 0)
    def _():
        s1_ref[...] = jnp.zeros_like(s1_ref)
        s2_ref[...] = jnp.zeros_like(s2_ref)

    o = out_ref[...].astype(jnp.float32)        # (B, tile, Dp)
    t = tgt_ref[...].astype(jnp.float32)        # (B, tile, Dp)
    b = base_ref[...].astype(jnp.float32)       # (B, Dp), resident constant block

    d1 = jnp.abs(o - t)                         # |output - target|
    d2 = jnp.abs(b[:, None, :] - t)             # |baseline - target|

    def accumulate(a1, a2):
        if sub > 1:
            # Fold (B, tile, Dp) into (sub=8, Dp) with pure per-vreg adds
            # (no cross-sublane XLU work per step).
            a1 = jnp.sum(a1.reshape(-1, sub, a1.shape[-1]), axis=0)
            a2 = jnp.sum(a2.reshape(-1, sub, a2.shape[-1]), axis=0)
        else:
            a1 = jnp.sum(a1, axis=(0, 1))[None, :]
            a2 = jnp.sum(a2, axis=(0, 1))[None, :]
        s1_ref[...] += a1[None]
        s2_ref[...] += a2[None]

    if maybe_partial:
        lb = c * steps + i                      # logical time-block index
        is_full = lb < full_blocks

        @pl.when(is_full)
        def _():
            accumulate(d1, d2)

        @pl.when(lb >= full_blocks)
        def _():
            # Tail block (partially valid) or overflow block from the uneven
            # core split (fully masked). jnp.where keeps padded garbage/NaN out.
            t_idx = lb * tile + lax.broadcasted_iota(jnp.int32, d1.shape, 1)
            keep = t_idx < t_total
            accumulate(jnp.where(keep, d1, 0.0), jnp.where(keep, d2, 0.0))
    else:
        accumulate(d1, d2)


def mase_loss_pallas(target, output, train_data, m=1, *, max_tile_rows=None):
    """MASE loss. target/output: (B, T, D) (or 1-D/2-D per the torch module),
    train_data: (B or 1, T_train, D)."""
    target = jnp.asarray(target)
    output = jnp.asarray(output)
    train_data = jnp.asarray(train_data)

    # Shape normalization mirroring MASELoss.forward.
    if train_data.ndim < 3:
        train_data = train_data[None]
    if m == 1 and target.ndim == 1:
        output = output[None, :, None]
        target = target[None, :, None]
    if target.ndim == 2:
        output = output[None]
        target = target[None]

    B, T, D = target.shape
    assert output.shape == (B, T, D)
    Bt, Tt, Dt = train_data.shape
    assert Dt == D and (Bt == B or Bt == 1), \
        "train_data feature dim must match; batch must match or be 1"

    # Baseline = mean over the training time axis. Plain XLA reduce (already at
    # HBM roofline) — saves a kernel launch + round trip (perf review).
    baseline = jnp.mean(train_data, axis=1, dtype=jnp.float32)      # (Bt, D)
    if Bt == 1 and B > 1:
        baseline = jnp.broadcast_to(baseline, (B, D))               # torch broadcast path

    # Lane density: merge r adjacent time steps into the feature axis so the lane
    # dim is (close to) 128 wide. Free contiguous reshape; mask/time semantics
    # are preserved because r divides T.
    r = 1
    if D < 128:
        for cand in range(min(128 // D, T), 1, -1):
            if T % cand == 0:
                r = cand
                break
    Dp, Tp = D * r, T // r
    out2 = output.reshape(B, Tp, Dp)
    tgt2 = target.reshape(B, Tp, Dp)
    base2 = jnp.tile(baseline, (1, r)) if r > 1 else baseline        # (B, Dp) f32

    itemsizes = (jnp.dtype(output.dtype).itemsize, jnp.dtype(target.dtype).itemsize)
    align = max(8, 32 // max(min(itemsizes), 1))      # 8 f32 / 16 bf16 / 32 int8
    bytes_per_row = (itemsizes[0] + itemsizes[1]) * B * Dp
    tile = _pick_tile(Tp, bytes_per_row, align=align,
                      budget_bytes=28 << 20, max_rows=max_tile_rows)

    nT = pl.cdiv(Tp, tile)                 # logical time blocks
    n_split = 2 if nT >= 2 else 1          # dual-TC split (v7x); serial halves elsewhere
    steps = pl.cdiv(nT, n_split)
    sub = 8 if tile % 8 == 0 else 1
    full_blocks = Tp // tile
    maybe_partial = (Tp % tile != 0) or (n_split * steps != nT)

    kernel = functools.partial(
        _mase_kernel, tile=tile, t_total=Tp, steps=steps,
        full_blocks=full_blocks, sub=sub, maybe_partial=maybe_partial)

    def tin_map(c, i):
        # Clamp overflow blocks of the uneven core split to a valid block; their
        # contribution is zeroed in-kernel by the mask.
        return (0, jnp.minimum(c * steps + i, nT - 1), 0)

    s1, s2 = pl.pallas_call(
        kernel,
        out_shape=(jax.ShapeDtypeStruct((n_split, sub, Dp), jnp.float32),
                   jax.ShapeDtypeStruct((n_split, sub, Dp), jnp.float32)),
        grid=(n_split, steps),
        in_specs=[
            pl.BlockSpec((B, tile, Dp), tin_map),              # output (streamed)
            pl.BlockSpec((B, tile, Dp), tin_map),              # target (streamed)
            pl.BlockSpec((B, Dp), lambda c, i: (0, 0)),        # baseline (resident)
        ],
        out_specs=(pl.BlockSpec((1, sub, Dp), lambda c, i: (c, 0, 0)),
                   pl.BlockSpec((1, sub, Dp), lambda c, i: (c, 0, 0))),
        compiler_params=pltpu.CompilerParams(
            dimension_semantics=("parallel", "arbitrary"),
            vmem_limit_bytes=48 << 20),
    )(out2, tgt2, base2)

    # Tiny epilogue: collapse per-core partial sums, clamp, ratio.
    inv_n = 1.0 / float(B * T * D)
    mae2 = jnp.sum(s1) * inv_n
    mase4 = jnp.sum(s2) * inv_n
    mase4 = jnp.where(mase4 < 0.001, 0.001, mase4)
    return mae2 / mase4


def mase_loss_ref(target, output, train_data, m=1):
    """Pure-JAX reference mirroring the torch module."""
    target = jnp.asarray(target, jnp.float32)
    output = jnp.asarray(output, jnp.float32)
    train_data = jnp.asarray(train_data, jnp.float32)
    if train_data.ndim < 3:
        train_data = train_data[None]
    if m == 1 and target.ndim == 1:
        output = output[None, :, None]
        target = target[None, :, None]
    if target.ndim == 2:
        output = output[None]
        target = target[None]
    baseline = jnp.broadcast_to(jnp.mean(train_data, axis=1, keepdims=True),
                                output.shape)
    mae2 = jnp.mean(jnp.abs(output - target))
    mase4 = jnp.mean(jnp.abs(baseline - target))
    mase4 = jnp.where(mase4 < 0.001, 0.001, mase4)
    return mae2 / mase4


if __name__ == "__main__":
    ks = jax.random.split(jax.random.PRNGKey(0), 9)

    # Case 1: main shapes (B=2, T=16, D=32) — lane-merged to (2, 4, 128), single block.
    B, T, D, Tt = 2, 16, 32, 24
    target = jax.random.normal(ks[0], (B, T, D), dtype=jnp.float32)
    output = target + 0.3 * jax.random.normal(ks[1], (B, T, D), dtype=jnp.float32)
    train = jax.random.normal(ks[2], (B, Tt, D), dtype=jnp.float32)
    got = jax.block_until_ready(mase_loss_pallas(target, output, train))
    ref = mase_loss_ref(target, output, train)
    assert jnp.allclose(got, ref, rtol=1e-5, atol=1e-6), (got, ref)

    # Case 2: multi-block grid with dual-core split, tail mask and an overflow block
    # (D=128 -> no lane merge; T=20 with 8-row tiles -> 3 logical blocks on a 2x2 grid).
    B2, T2, D2, Tt2 = 2, 20, 128, 12
    target2 = jax.random.normal(ks[3], (B2, T2, D2), dtype=jnp.float32)
    output2 = target2 + 0.5 * jax.random.normal(ks[4], (B2, T2, D2), dtype=jnp.float32)
    train2 = jax.random.normal(ks[5], (B2, Tt2, D2), dtype=jnp.float32)
    got2 = jax.block_until_ready(
        mase_loss_pallas(target2, output2, train2, max_tile_rows=8))
    ref2 = mase_loss_ref(target2, output2, train2)
    assert jnp.allclose(got2, ref2, rtol=1e-5, atol=1e-6), (got2, ref2)

    # Case 3: bf16 inputs (16-row tile alignment), lane merge, masked tail,
    # and train_data batch=1 broadcast across the output batch.
    B3, T3, D3, Tt3 = 2, 160, 32, 40
    target3 = jax.random.normal(ks[6], (B3, T3, D3), dtype=jnp.float32).astype(jnp.bfloat16)
    output3 = jax.random.normal(ks[7], (B3, T3, D3), dtype=jnp.float32).astype(jnp.bfloat16)
    train3 = jax.random.normal(ks[8], (1, Tt3, D3), dtype=jnp.float32).astype(jnp.bfloat16)
    got3 = jax.block_until_ready(
        mase_loss_pallas(target3, output3, train3, max_tile_rows=16))
    ref3 = mase_loss_ref(target3, output3, train3)
    assert jnp.allclose(got3, ref3, rtol=2e-5, atol=1e-6), (got3, ref3)

    print("KERNEL_OK")
</pallas_src>

<mosaic_0001>
module attributes {stable_mosaic.version = 11 : i64} {
  func.func @_mase_kernel(%arg0: i32, %arg1: i32, %arg2: memref<2x4x128xf32, #tpu.memory_space<vmem>>, %arg3: memref<2x4x128xf32, #tpu.memory_space<vmem>>, %arg4: memref<2x128xf32, #tpu.memory_space<vmem>>, %arg5: memref<1x1x128xf32, #tpu.memory_space<vmem>>, %arg6: memref<1x1x128xf32, #tpu.memory_space<vmem>>) attributes {dimension_semantics = [#tpu.dimension_semantics<parallel>, #tpu.dimension_semantics<arbitrary>], iteration_bounds = array<i64: 1, 1>, scalar_prefetch = 0 : i64, scratch_operands = 0 : i64, tpu.core_type = #tpu.core_type<tc>, window_params = [{transform_indices = @transform_0, window_bounds = array<i64: 2, 4, 128>}, {transform_indices = @transform_1, window_bounds = array<i64: 2, 4, 128>}, {pipeline_mode = #tpu.pipeline_mode<synchronous>, transform_indices = @transform_2, window_bounds = array<i64: 2, 128>}, {transform_indices = @transform_3, window_bounds = array<i64: 1, 1, 128>}, {transform_indices = @transform_4, window_bounds = array<i64: 1, 1, 128>}]} {
    %c0_i32 = arith.constant 0 : i32
    %0 = arith.cmpi eq, %arg1, %c0_i32 : i32
    %1 = arith.extui %0 : i1 to i32
    %c0_i32_0 = arith.constant 0 : i32
    %2 = arith.cmpi ne, %1, %c0_i32_0 : i32
    scf.if %2 {
      %cst_21 = arith.constant 0.000000e+00 : f32
      %24 = vector.broadcast %cst_21 : f32 to vector<1x1x128xf32>
      %c0_22 = arith.constant 0 : index
      %c0_23 = arith.constant 0 : index
      %c0_24 = arith.constant 0 : index
      %25 = vector.load %arg5[%c0_22, %c0_23, %c0_24] : memref<1x1x128xf32, #tpu.memory_space<vmem>>, vector<1x1x128xf32>
      tpu.vector_store %arg5[%c0_22, %c0_23, %c0_24], %24 {strides = array<i32>} : memref<1x1x128xf32, #tpu.memory_space<vmem>>, vector<1x1x128xf32>,
      %cst_25 = arith.constant 0.000000e+00 : f32
      %26 = vector.broadcast %cst_25 : f32 to vector<1x1x128xf32>
      %c0_26 = arith.constant 0 : index
      %c0_27 = arith.constant 0 : index
      %c0_28 = arith.constant 0 : index
      %27 = vector.load %arg6[%c0_26, %c0_27, %c0_28] : memref<1x1x128xf32, #tpu.memory_space<vmem>>, vector<1x1x128xf32>
      tpu.vector_store %arg6[%c0_26, %c0_27, %c0_28], %26 {strides = array<i32>} : memref<1x1x128xf32, #tpu.memory_space<vmem>>, vector<1x1x128xf32>,
    } else {
    }
    %c0 = arith.constant 0 : index
    %c0_1 = arith.constant 0 : index
    %c0_2 = arith.constant 0 : index
    %3 = vector.load %arg2[%c0, %c0_1, %c0_2] : memref<2x4x128xf32, #tpu.memory_space<vmem>>, vector<2x4x128xf32>
    %c0_3 = arith.constant 0 : index
    %c0_4 = arith.constant 0 : index
    %c0_5 = arith.constant 0 : index
    %4 = vector.load %arg3[%c0_3, %c0_4, %c0_5] : memref<2x4x128xf32, #tpu.memory_space<vmem>>, vector<2x4x128xf32>
    %c0_6 = arith.constant 0 : index
    %c0_7 = arith.constant 0 : index
    %5 = vector.load %arg4[%c0_6, %c0_7] : memref<2x128xf32, #tpu.memory_space<vmem>>, vector<2x128xf32>
    %6 = arith.subf %3, %4 : vector<2x4x128xf32>
    %7 = math.absf %6 : vector<2x4x128xf32>
    %8 = vector.shape_cast %5 : vector<2x128xf32> to vector<2x1x128xf32>
    %9 = vector.broadcast %8 : vector<2x1x128xf32> to vector<2x4x128xf32>
    %10 = arith.subf %9, %4 : vector<2x4x128xf32>
    %11 = math.absf %10 : vector<2x4x128xf32>
    %cst = arith.constant dense<0.000000e+00> : vector<128xf32>
    %12 = vector.multi_reduction <add>, %7, %cst [0, 1] : vector<2x4x128xf32> to vector<128xf32>
    %13 = vector.shape_cast %12 : vector<128xf32> to vector<1x128xf32>
    %cst_8 = arith.constant dense<0.000000e+00> : vector<128xf32>
    %14 = vector.multi_reduction <add>, %11, %cst_8 [0, 1] : vector<2x4x128xf32> to vector<128xf32>
    %15 = vector.shape_cast %14 : vector<128xf32> to vector<1x128xf32>
    %c0_9 = arith.constant 0 : index
    %c0_10 = arith.constant 0 : index
    %c0_11 = arith.constant 0 : index
    %16 = vector.load %arg5[%c0_9, %c0_10, %c0_11] : memref<1x1x128xf32, #tpu.memory_space<vmem>>, vector<1x1x128xf32>
    %17 = vector.shape_cast %13 : vector<1x128xf32> to vector<1x1x128xf32>
    %18 = arith.addf %16, %17 : vector<1x1x128xf32>
    %c0_12 = arith.constant 0 : index
    %c0_13 = arith.constant 0 : index
    %c0_14 = arith.constant 0 : index
    %19 = vector.load %arg5[%c0_12, %c0_13, %c0_14] : memref<1x1x128xf32, #tpu.memory_space<vmem>>, vector<1x1x128xf32>
    tpu.vector_store %arg5[%c0_12, %c0_13, %c0_14], %18 {strides = array<i32>} : memref<1x1x128xf32, #tpu.memory_space<vmem>>, vector<1x1x128xf32>,
    %c0_15 = arith.constant 0 : index
    %c0_16 = arith.constant 0 : index
    %c0_17 = arith.constant 0 : index
    %20 = vector.load %arg6[%c0_15, %c0_16, %c0_17] : memref<1x1x128xf32, #tpu.memory_space<vmem>>, vector<1x1x128xf32>
    %21 = vector.shape_cast %15 : vector<1x128xf32> to vector<1x1x128xf32>
    %22 = arith.addf %20, %21 : vector<1x1x128xf32>
    %c0_18 = arith.constant 0 : index
    %c0_19 = arith.constant 0 : index
    %c0_20 = arith.constant 0 : index
    %23 = vector.load %arg6[%c0_18, %c0_19, %c0_20] : memref<1x1x128xf32, #tpu.memory_space<vmem>>, vector<1x1x128xf32>
    tpu.vector_store %arg6[%c0_18, %c0_19, %c0_20], %22 {strides = array<i32>} : memref<1x1x128xf32, #tpu.memory_space<vmem>>, vector<1x1x128xf32>,
    return
  }
  func.func @transform_0(%arg0: i32, %arg1: i32) -> (i32, i32, i32) {
    %c1_i32 = arith.constant 1 : i32
    %0 = arith.muli %arg0, %c1_i32 : i32
    %1 = arith.addi %0, %arg1 : i32
    %c0_i32 = arith.constant 0 : i32
    %2 = arith.minsi %1, %c0_i32 : i32
    %c0_i32_0 = arith.constant 0 : i32
    %c0_i32_1 = arith.constant 0 : i32
    %c0_i32_2 = arith.constant 0 : i32
    return %c0_i32_0, %2, %c0_i32_1 : i32, i32, i32
  }
  func.func @transform_1(%arg0: i32, %arg1: i32) -> (i32, i32, i32) {
    %c1_i32 = arith.constant 1 : i32
    %0 = arith.muli %arg0, %c1_i32 : i32
    %1 = arith.addi %0, %arg1 : i32
    %c0_i32 = arith.constant 0 : i32
    %2 = arith.minsi %1, %c0_i32 : i32
    %c0_i32_0 = arith.constant 0 : i32
    %c0_i32_1 = arith.constant 0 : i32
    %c0_i32_2 = arith.constant 0 : i32
    return %c0_i32_0, %2, %c0_i32_1 : i32, i32, i32
  }
  func.func @transform_2(%arg0: i32, %arg1: i32) -> (i32, i32) {
    %c0_i32 = arith.constant 0 : i32
    %c0_i32_0 = arith.constant 0 : i32
    %c0_i32_1 = arith.constant 0 : i32
    return %c0_i32, %c0_i32_0 : i32, i32
  }
  func.func @transform_3(%arg0: i32, %arg1: i32) -> (i32, i32, i32) {
    %c0_i32 = arith.constant 0 : i32
    %c0_i32_0 = arith.constant 0 : i32
    %c0_i32_1 = arith.constant 0 : i32
    return %arg0, %c0_i32, %c0_i32_0 : i32, i32, i32
  }
  func.func @transform_4(%arg0: i32, %arg1: i32) -> (i32, i32, i32) {
    %c0_i32 = arith.constant 0 : i32
    %c0_i32_0 = arith.constant 0 : i32
    %c0_i32_1 = arith.constant 0 : i32
    return %arg0, %c0_i32, %c0_i32_0 : i32, i32, i32
  }
}

</mosaic_0001>

<llo_original>
// kernel: tpu_custom_call.1
$region0: #{tpu_custom_call.1}
  #allocation0 [shape = 'u32[]', space=smem, size = 0x4, offset = 0x4, fixed_abs, tag = 'smem constant byte address 0x4 - core index']
  #allocation1 [shape = 'u32[144,128]{1,0:T(1,128)}', space=vmem, size = 0x12000, scoped, tag = 'internal scratch']
  %s0 = inlined_call_operand.hbm [shape: f32[2,4,128], index: 0, kind: input, shape index: {}]
  %s1 = inlined_call_operand.hbm [shape: f32[2,4,128], index: 1, kind: input, shape index: {}]
  %s2 = inlined_call_operand.vmem [shape: f32[2,128], index: 2, kind: input, shape index: {}]
  %s3 = inlined_call_operand.hbm [shape: f32[1,1,128], index: 3, kind: output, shape index: {0}]
  %s4 = inlined_call_operand.hbm [shape: f32[1,1,128], index: 4, kind: output, shape index: {1}]
  %5 = xla_tuple %s3, %s4
  %s6 = sld [smem:[#allocation0]]
  $region42: #{tpu_custom_call.1} parent=0
    _
  %s8 = ssub.s32 1, %s6
  %s9 = scalar_select 0, %s8, %s6
  $region1: #{tpu_custom_call.1} parent=0
    #allocation2 [shape = 'u8[4096]{0}', space=vmem, size = 0x1000, scoped, tag = 'input window, operand 0, single buffered']
    #allocation3 [shape = 's32[1]{0}', space=sflag, size = 0x4, scoped, tag = 'scoped memory for tpu_custom_call.1']
    #allocation4 [shape = 's32[1]{0}', space=sflag, size = 0x4, scoped, tag = 'scoped memory for tpu_custom_call.1']
    #allocation5 [shape = 'u8[4096]{0}', space=vmem, size = 0x1000, scoped, tag = 'input window, operand 1, single buffered']
    #allocation6 [shape = 's32[1]{0}', space=sflag, size = 0x4, scoped, tag = 'scoped memory for tpu_custom_call.1']
    #allocation7 [shape = 'u8[512]{0}', space=vmem, size = 0x400, scoped, tag = 'output window, operand 0, single buffered']
    #allocation8 [shape = 'u8[512]{0}', space=vmem, size = 0x400, scoped, tag = 'output window, operand 1, single buffered']
    #allocation9 [shape = 's32[1]{0}', space=sflag, size = 0x4, scoped, tag = 'scoped memory for tpu_custom_call.1']
    %10 = vsyncpa [#allocation3], 0
    %11 = vsyncpa [#allocation6], 0
    %12 = vsyncpa [#allocation4], 0
    %13 = vsyncpa [#allocation9], 0
    // Predicated region
    $region2: #{tpu_custom_call.1} parent=1 // pred_check
      _
    $region3: #{tpu_custom_call.1} parent=1 // pred_check_branch
      %15 = sbr.rel (0) target = $region5
    $region4: #{tpu_custom_call.1} parent=1 // pred_region
      %s16 = sadd.s32 0, 0
      %p17 = scmp.lt.s32.totalorder %s16, 0
      %s18 = scalar_select %p17, %s16, 0
      %s20 = ssub.s32 128, 128
      %21 = vsyncadd [#allocation3], %s20
      %s22 = smul.addr %s18, 64
      %s23 = scalar_lea.hbm %s0, %s22
      %s24 = sshll.u32 [#allocation2], 4
      %s25 = int_to_ptr.vmem [resolvable:$true] %s24
      %30 = dma.hbm_to_vmem [thread:$0]  %s23, 128, %s25, [#allocation3], 64, 64, 4
    $region5: #{tpu_custom_call.1} parent=1 // pred_fallthru
      _
    // Predicated region
    $region6: #{tpu_custom_call.1} parent=1 // pred_check
      _
    $region7: #{tpu_custom_call.1} parent=1 // pred_check_branch
      %32 = sbr.rel (0) target = $region9
    $region8: #{tpu_custom_call.1} parent=1 // pred_region
      %s33 = sadd.s32 0, 0
      %p34 = scmp.lt.s32.totalorder %s33, 0
      %s35 = scalar_select %p34, %s33, 0
      %s37 = ssub.s32 128, 128
      %38 = vsyncadd [#allocation6], %s37
      %s39 = smul.addr %s35, 64
      %s40 = scalar_lea.hbm %s1, %s39
      %s41 = sshll.u32 [#allocation5], 4
      %s42 = int_to_ptr.vmem [resolvable:$true] %s41
      %47 = dma.hbm_to_vmem [thread:$0]  %s40, 128, %s42, [#allocation6], 64, 64, 4
    $region9: #{tpu_custom_call.1} parent=1 // pred_fallthru
      _
    // Predicated region
    $region10: #{tpu_custom_call.1} parent=1 // pred_check
      _
    $region11: #{tpu_custom_call.1} parent=1 // pred_check_branch
      %49 = sbr.rel (0) target = $region13
    $region12: #{tpu_custom_call.1} parent=1 // pred_region
      _
    $region13: #{tpu_custom_call.1} parent=1 // pred_fallthru
      _
    // Predicated region
    $region14: #{tpu_custom_call.1} parent=1 // pred_check
      _
    $region15: #{tpu_custom_call.1} parent=1 // pred_check_branch
      %51 = sbr.rel (0) target = $region17
    $region16: #{tpu_custom_call.1} parent=1 // pred_region
      %52 = dma.done [#allocation3], 128
    $region17: #{tpu_custom_call.1} parent=1 // pred_fallthru
      _
    // Predicated region
    $region18: #{tpu_custom_call.1} parent=1 // pred_check
      _
    $region19: #{tpu_custom_call.1} parent=1 // pred_check_branch
      %54 = sbr.rel (0) target = $region21
    $region20: #{tpu_custom_call.1} parent=1 // pred_region
      %55 = dma.done [#allocation6], 128
    $region21: #{tpu_custom_call.1} parent=1 // pred_fallthru
      _
    %s56 = sadd.s32 0, 0
    %p57 = scmp.lt.s32.totalorder %s56, 0
    %s58 = scalar_select %p57, %s56, 0
    %s59 = sadd.s32 0, 0
    %p60 = scmp.lt.s32.totalorder %s59, 0
    %s61 = scalar_select %p60, %s59, 0
    %p62 = scmp.eq.s32.totalorder 0, 0
    // Predicated region
    $region22: #{tpu_custom_call.1} parent=1 // pred_check
      %p63 = pneg %p62
    $region23: #{tpu_custom_call.1} parent=1 // pred_check_branch
      %65 = sbr.rel (%p63) target = $region25
    $region24: #{tpu_custom_call.1} parent=1 // pred_region
      %66 = vst [vmem:[#allocation7] sm:$0x1] 0.0
      %67 = vst [vmem:[#allocation8] sm:$0x1] 0.0
    $region25: #{tpu_custom_call.1} parent=1 // pred_fallthru
      _
    %v68 = vld [vmem:[#allocation2] sm:$0xf]
    %v69 = vld [vmem:[#allocation2 + $0x4] sm:$0xf]
    %v70 = vld [vmem:[#allocation5] sm:$0xf]
    %v71 = vld [vmem:[#allocation5 + $0x4] sm:$0xf]
    %v72 = vld [vmem:[%s2] sm:$0x3]
    %v73 = vsub.f32 %v68, %v70
    %v74 = vsub.f32 %v69, %v71
    %v75 = vand.u32 2147483647, %v73
    %v76 = vand.u32 2147483647, %v74
    %v79 = vunpack.c.l.s4 1966171168
    %v80 = vunpack.c.0.s8 %v79
    %v81 = vlaneseq
    %v82 = vshrl.u32 %v81, 7
    %v83 = vsub.s32 %v80, %v82
    %v84 = vrot.slane %v72, %v83
    %v85 = vcombine.high %v84, %v84
    %v87 = vunpack.c.l.s4 1966171168
    %v88 = vunpack.c.0.s8 %v87
    %v89 = vlaneseq
    %v90 = vshrl.u32 %v89, 7
    %v91 = vsub.s32 %v88, %v90
    %v92 = vrot.slane %v84, %v91
    %v94 = vunpack.c.l.s4 1966171168
    %v95 = vunpack.c.0.s8 %v94
    %v96 = vlaneseq
    %v97 = vshrl.u32 %v96, 7
    %v98 = vsub.s32 %v95, %v97
    %v99 = vrot.slane %v85, %v98
    %v100 = vlaneseq
    %v101 = vshrl.u32 %v100, 7
    %v102 = vsub.s32 0, %v101
    %v103 = vrot.slane %v92, %v102
    %v104 = vlaneseq
    %v105 = vshrl.u32 %v104, 7
    %v106 = vsub.s32 0, %v105
    %v107 = vrot.slane %v99, %v106
    %v110 = vsub.f32 %v103, %v70
    %v111 = vsub.f32 %v107, %v71
    %v112 = vand.u32 2147483647, %v110
    %v113 = vand.u32 2147483647, %v111
    %vm114 = vcmask 1043456
    %v115 = vsel %vm114, %v75, 0.0
    %v116 = vsel %vm114, %v76, 0.0
    %v117 = vadd.f32 %v115, %v116
    %v118 = vrot.slane %v117, 4
    %v119 = vadd.f32 %v117, %v118
    %v120 = vrot.slane %v119, 2
    %v121 = vadd.f32 %v119, %v120
    %v122 = vrot.slane %v121, 1
    %v123 = vadd.f32 %v121, %v122
    %v124 = vsel %vm114, %v112, 0.0
    %v125 = vsel %vm114, %v113, 0.0
    %v126 = vadd.f32 %v124, %v125
    %v127 = vrot.slane %v126, 4
    %v128 = vadd.f32 %v126, %v127
    %v129 = vrot.slane %v128, 2
    %v130 = vadd.f32 %v128, %v129
    %v131 = vrot.slane %v130, 1
    %v132 = vadd.f32 %v130, %v131
    %v133 = vld [vmem:[#allocation7] sm:$0x1]
    %v134 = vadd.f32 %v133, %v123
    %135 = vst [vmem:[#allocation7] sm:$0x1] %v134
    %v136 = vld [vmem:[#allocation8] sm:$0x1]
    %v137 = vadd.f32 %v136, %v132
    %138 = vst [vmem:[#allocation8] sm:$0x1] %v137
    // Predicated region
    $region26: #{tpu_custom_call.1} parent=1 // pred_check
      _
    $region27: #{tpu_custom_call.1} parent=1 // pred_check_branch
      %140 = sbr.rel (0) target = $region29
    $region28: #{tpu_custom_call.1} parent=1 // pred_region
      %s142 = ssub.s32 16, 16
      %143 = vsyncadd [#allocation4], %s142
      %s145 = sshll.u32 [#allocation7], 4
      %s146 = int_to_ptr.vmem [resolvable:$true] %s145
      %148 = dma.vmem_to_hbm [thread:$0]  %s146, 16, %s3, [#allocation4]
    $region29: #{tpu_custom_call.1} parent=1 // pred_fallthru
      _
    // Predicated region
    $region30: #{tpu_custom_call.1} parent=1 // pred_check
      _
    $region31: #{tpu_custom_call.1} parent=1 // pred_check_branch
      %150 = sbr.rel (0) target = $region33
    $region32: #{tpu_custom_call.1} parent=1 // pred_region
      %s152 = ssub.s32 16, 16
      %153 = vsyncadd [#allocation9], %s152
      %s155 = sshll.u32 [#allocation8], 4
      %s156 = int_to_ptr.vmem [resolvable:$true] %s155
      %158 = dma.vmem_to_hbm [thread:$0]  %s156, 16, %s4, [#allocation9]
    $region33: #{tpu_custom_call.1} parent=1 // pred_fallthru
      _
    // Predicated region
    $region34: #{tpu_custom_call.1} parent=1 // pred_check
      _
    $region35: #{tpu_custom_call.1} parent=1 // pred_check_branch
      %160 = sbr.rel (0) target = $region37
    $region36: #{tpu_custom_call.1} parent=1 // pred_region
      %161 = dma.done [#allocation4], 16
    $region37: #{tpu_custom_call.1} parent=1 // pred_fallthru
      _
    // Predicated region
    $region38: #{tpu_custom_call.1} parent=1 // pred_check
      _
    $region39: #{tpu_custom_call.1} parent=1 // pred_check_branch
      %163 = sbr.rel (0) target = $region41
    $region40: #{tpu_custom_call.1} parent=1 // pred_region
      %164 = dma.done [#allocation9], 16
    $region41: #{tpu_custom_call.1} parent=1 // pred_fallthru
      _
    %165 = vsyncpa [#allocation3], 1
    %166 = vsyncpa [#allocation6], 1
    %167 = vsyncpa [#allocation4], 1
    %168 = vsyncpa [#allocation9], 1

</llo_original>
